<compile_context>
chip_gen: v5e
topology: v5e:2x2
jax: 0.10.0
libtpu: 0.0.40
codegen_flags: <defaults>
</compile_context>

<pallas_src>
import jax
import jax.numpy as jnp
from jax import lax
from jax.experimental import pallas as pl
from jax.experimental.pallas import tpu as pltpu


# ---------------------------------------------------------------------------
# Shared selection + reduction helper (runs inside the kernels)
# ---------------------------------------------------------------------------
def _rank_select_reduce(drow, dcol, loss_row, n, kf, out_ref):
    """Bottom-k (stable) selection and weighted-mean-over-nonzeros.

    drow: (1, N) difficulty (lane-major view)
    dcol: (N, 1) difficulty (sublane-major view) -- same bits as drow
    loss_row: (1, N) loss
    """
    # pred[j, i] = 1 iff example j strictly precedes example i in a stable
    # ascending sort of (difficulty, original index).
    dcol_mat = jnp.broadcast_to(dcol, (n, n))            # [j, i] -> d_j
    drow_mat = jnp.broadcast_to(drow, (n, n))            # [j, i] -> d_i
    sub = lax.broadcasted_iota(jnp.int32, (n, n), 0)     # j  (consumed immediately)
    lane = lax.broadcasted_iota(jnp.int32, (n, n), 1)    # i
    pred = (dcol_mat < drow_mat) | ((dcol_mat == drow_mat) & (sub < lane))
    # rank[i] = number of predecessors; f32 accumulation is exact for N < 2^24.
    rank = jnp.sum(pred.astype(jnp.float32), axis=0, keepdims=True)   # (1, N)
    weight = (rank < kf).astype(jnp.float32)                           # (1, N)
    masked = loss_row * weight
    total = jnp.sum(masked)
    nnz = jnp.sum((masked != 0.0).astype(jnp.float32))   # torch.count_nonzero
    # NOTE: nnz == 0 (k == 0 or all selected losses exactly 0) yields NaN,
    # matching the torch reference (sum / count_nonzero).
    out_ref[...] = jnp.broadcast_to(total / nnz, (1, 1))


# ---------------------------------------------------------------------------
# Kernel A: difficulty == loss  (single tiny block)
# ---------------------------------------------------------------------------
def _make_spl_loss_kernel(k, n):
    kf = float(k)

    def kernel(loss_row_ref, loss_col_ref, out_ref):
        # Both views are reshapes of the same array -> tie-break compares
        # bitwise-identical values.
        _rank_select_reduce(loss_row_ref[...], loss_col_ref[...],
                            loss_row_ref[...], n, kf, out_ref)

    return kernel


# ---------------------------------------------------------------------------
# Kernel B (fused): per-example grad L2 norm over tiled D + selection + mean
# ---------------------------------------------------------------------------
def _make_spl_grad_kernel(k, n, num_d_tiles):
    kf = float(k)

    def kernel(loss_ref, g_ref, out_ref, ss_ref):
        step = pl.program_id(0)

        @pl.when(step == 0)
        def _():
            ss_ref[...] = jnp.zeros_like(ss_ref)

        # Native-dtype DMA; cast to f32 per tile before squaring/accumulating.
        g = g_ref[...].astype(jnp.float32)                       # (N, tile_d)
        ss_ref[...] += jnp.sum(g * g, axis=-1, keepdims=True)    # (N, 1)

        @pl.when(step == num_d_tiles - 1)
        def _():
            dcol = jnp.sqrt(ss_ref[...])                         # (N, 1)
            # Derive the lane-major (1, N) view in-kernel without a transpose:
            # select the diagonal of the lane-broadcast matrix and reduce over
            # sublanes (adds exact zeros -> bit-identical to dcol entries).
            dmat = jnp.broadcast_to(dcol, (n, n))
            sub = lax.broadcasted_iota(jnp.int32, (n, n), 0)
            lane = lax.broadcasted_iota(jnp.int32, (n, n), 1)
            drow = jnp.sum(jnp.where(sub == lane, dmat, 0.0),
                           axis=0, keepdims=True)                # (1, N)
            _rank_select_reduce(drow, dcol, loss_ref[...], n, kf, out_ref)

    return kernel


# ---------------------------------------------------------------------------
# Tile-size selection for the D (reduction) axis
# ---------------------------------------------------------------------------
def _pick_tile_d(n, d, itemsize, cap_bytes=4 * 1024 * 1024):
    """Largest multiple-of-128 divisor of d with n*tile*itemsize <= cap."""
    if d % 128 != 0:
        return d  # single full block (block dim == array dim is always legal)
    max_lanes = max(128, (cap_bytes // (n * itemsize)) // 128 * 128)
    t = min(d, max_lanes)
    t -= t % 128
    while t >= 128:
        if d % t == 0:
            return t
        t -= 128
    return d


# ---------------------------------------------------------------------------
# Wrapper
# ---------------------------------------------------------------------------
def spl_forward(loss, gradients=None, difficulty_type="loss", lmda=0.1,
                tile_d=None):
    loss = loss.astype(jnp.float32)
    n = loss.shape[0]
    k = int(n * lmda)  # static, matches int(loss.numel() * self.lmda)
    loss_row = loss.reshape(1, n)

    if difficulty_type == "loss":
        loss_col = loss.reshape(n, 1)
        out = pl.pallas_call(
            _make_spl_loss_kernel(k, n),
            grid=(1,),
            in_specs=[
                pl.BlockSpec((1, n), lambda i: (0, 0)),
                pl.BlockSpec((n, 1), lambda i: (0, 0)),
            ],
            out_specs=pl.BlockSpec((1, 1), lambda i: (0, 0)),
            out_shape=jax.ShapeDtypeStruct((1, 1), jnp.float32),
            compiler_params=pltpu.CompilerParams(
                dimension_semantics=("arbitrary",)),
        )(loss_row, loss_col)

    elif difficulty_type == "gradients":
        g2d = gradients.reshape(n, -1)            # NCHW -> [N, D], NATIVE dtype
        d = g2d.shape[1]
        itemsize = jnp.dtype(g2d.dtype).itemsize
        td = tile_d if tile_d is not None else _pick_tile_d(n, d, itemsize)
        if d % td != 0:
            raise ValueError(f"tile_d={td} must divide D={d}")
        num_d = d // td

        out = pl.pallas_call(
            _make_spl_grad_kernel(k, n, num_d),
            grid=(num_d,),
            in_specs=[
                pl.BlockSpec((1, n), lambda s: (0, 0)),     # loss row (resident)
                pl.BlockSpec((n, td), lambda s: (0, s)),    # gradient D-tile
            ],
            out_specs=pl.BlockSpec((1, 1), lambda s: (0, 0)),
            out_shape=jax.ShapeDtypeStruct((1, 1), jnp.float32),
            scratch_shapes=[pltpu.VMEM((n, 1), jnp.float32)],  # sum-of-squares acc
            compiler_params=pltpu.CompilerParams(
                dimension_semantics=("arbitrary",),          # D is a reduction
                vmem_limit_bytes=32 * 1024 * 1024),
            cost_estimate=pl.CostEstimate(
                flops=3 * n * d + 6 * n * n,
                transcendentals=n,
                bytes_accessed=n * d * itemsize + n * 4 + 4),
        )(loss_row, g2d)
    else:
        raise NotImplementedError

    return out[0, 0]


# ---------------------------------------------------------------------------
# Pure-JAX reference for verification
# ---------------------------------------------------------------------------
def _ref_spl(loss, gradients, difficulty_type, lmda):
    n = loss.shape[0]
    if difficulty_type == "loss":
        diff = loss
    else:
        g = gradients.reshape(n, -1).astype(jnp.float32)
        diff = jnp.sqrt(jnp.sum(g * g, axis=-1))
    k = int(n * lmda)
    idx = jnp.argsort(diff)[:k]   # stable -> matches stable rank tie-break
    w = jnp.zeros_like(loss).at[idx].set(1.0)
    masked = loss * w
    return jnp.sum(masked) / jnp.count_nonzero(masked)


if __name__ == "__main__":
    key = jax.random.PRNGKey(0)
    k1, k2 = jax.random.split(key)

    # Small shapes: N=8 examples, per-example gradients of shape (C=4, H=16, W=16).
    N, C, H, W = 8, 4, 16, 16
    lmda = 0.5  # k = int(8 * 0.5) = 4 selected (lmda=0.1 would select 0 at N=8)

    loss = jax.random.uniform(k1, (N,), dtype=jnp.float32) + 0.1
    gradients = jax.random.normal(k2, (N, C, H, W), dtype=jnp.float32)
    gradients_bf16 = gradients.astype(jnp.bfloat16)

    out_loss = spl_forward(loss, gradients, difficulty_type="loss", lmda=lmda)
    out_grad = spl_forward(loss, gradients, difficulty_type="gradients", lmda=lmda)
    # Force multi-tile D accumulation (4 tiles) to exercise the pipelined path.
    out_grad_tiled = spl_forward(loss, gradients, difficulty_type="gradients",
                                 lmda=lmda, tile_d=256)
    # Native bf16 gradient DMA with in-kernel f32 cast, 8 tiles.
    out_grad_bf16 = spl_forward(loss, gradients_bf16, difficulty_type="gradients",
                                lmda=lmda, tile_d=128)
    jax.block_until_ready((out_loss, out_grad, out_grad_tiled, out_grad_bf16))

    ref_loss = _ref_spl(loss, gradients, "loss", lmda)
    ref_grad = _ref_spl(loss, gradients, "gradients", lmda)
    ref_grad_bf16 = _ref_spl(loss, gradients_bf16, "gradients", lmda)

    assert jnp.allclose(out_loss, ref_loss, rtol=1e-5, atol=1e-5), (out_loss, ref_loss)
    assert jnp.allclose(out_grad, ref_grad, rtol=1e-5, atol=1e-5), (out_grad, ref_grad)
    assert jnp.allclose(out_grad_tiled, ref_grad, rtol=1e-5, atol=1e-5), (
        out_grad_tiled, ref_grad)
    assert jnp.allclose(out_grad_bf16, ref_grad_bf16, rtol=1e-5, atol=1e-5), (
        out_grad_bf16, ref_grad_bf16)

    print("KERNEL_OK")
</pallas_src>

<mosaic_0001>
module attributes {stable_mosaic.version = 11 : i64} {
  func.func @kernel(%arg0: i32, %arg1: memref<1x8xf32, #tpu.memory_space<vmem>>, %arg2: memref<8x1xf32, #tpu.memory_space<vmem>>, %arg3: memref<1x1xf32, #tpu.memory_space<vmem>>) attributes {dimension_semantics = [#tpu.dimension_semantics<arbitrary>], iteration_bounds = array<i64: 1>, scalar_prefetch = 0 : i64, scratch_operands = 0 : i64, tpu.core_type = #tpu.core_type<tc>, window_params = [{pipeline_mode = #tpu.pipeline_mode<synchronous>, transform_indices = @transform_0, window_bounds = array<i64: 1, 8>}, {pipeline_mode = #tpu.pipeline_mode<synchronous>, transform_indices = @transform_1, window_bounds = array<i64: 8, 1>}, {pipeline_mode = #tpu.pipeline_mode<synchronous>, transform_indices = @transform_2, window_bounds = array<i64: 1, 1>}]} {
    %c0 = arith.constant 0 : index
    %c0_0 = arith.constant 0 : index
    %0 = vector.load %arg1[%c0, %c0_0] : memref<1x8xf32, #tpu.memory_space<vmem>>, vector<1x8xf32>
    %c0_1 = arith.constant 0 : index
    %c0_2 = arith.constant 0 : index
    %1 = vector.load %arg2[%c0_1, %c0_2] : memref<8x1xf32, #tpu.memory_space<vmem>>, vector<8x1xf32>
    %c0_3 = arith.constant 0 : index
    %c0_4 = arith.constant 0 : index
    %2 = vector.load %arg1[%c0_3, %c0_4] : memref<1x8xf32, #tpu.memory_space<vmem>>, vector<1x8xf32>
    %3 = vector.shape_cast %1 : vector<8x1xf32> to vector<8x1xf32>
    %4 = vector.broadcast %3 : vector<8x1xf32> to vector<8x8xf32>
    %5 = vector.shape_cast %0 : vector<1x8xf32> to vector<1x8xf32>
    %6 = vector.broadcast %5 : vector<1x8xf32> to vector<8x8xf32>
    %7 = tpu.iota {dimensions = array<i32: 0>} : vector<8x8xi32>
    %8 = tpu.iota {dimensions = array<i32: 1>} : vector<8x8xi32>
    %9 = arith.cmpf olt, %4, %6 : vector<8x8xf32>
    %10 = arith.cmpf oeq, %4, %6 : vector<8x8xf32>
    %11 = arith.cmpi slt, %7, %8 : vector<8x8xi32>
    %12 = arith.andi %10, %11 : vector<8x8xi1>
    %13 = arith.ori %9, %12 : vector<8x8xi1>
    %14 = arith.extui %13 : vector<8x8xi1> to vector<8x8xi32>
    %15 = arith.sitofp %14 : vector<8x8xi32> to vector<8x8xf32>
    %cst = arith.constant dense<0.000000e+00> : vector<8xf32>
    %16 = vector.multi_reduction <add>, %15, %cst [0] : vector<8x8xf32> to vector<8xf32>
    %17 = vector.shape_cast %16 : vector<8xf32> to vector<1x8xf32>
    %cst_5 = arith.constant 4.000000e+00 : f32
    %18 = vector.broadcast %cst_5 : f32 to vector<1x8xf32>
    %19 = arith.cmpf olt, %17, %18 : vector<1x8xf32>
    %20 = arith.extui %19 : vector<1x8xi1> to vector<1x8xi32>
    %21 = arith.sitofp %20 : vector<1x8xi32> to vector<1x8xf32>
    %22 = arith.mulf %2, %21 : vector<1x8xf32>
    %23 = vector.shape_cast %22 : vector<1x8xf32> to vector<1x1x8xf32>
    %cst_6 = arith.constant dense<0.000000e+00> : vector<1xf32>
    %24 = vector.multi_reduction <add>, %23, %cst_6 [1, 2] : vector<1x1x8xf32> to vector<1xf32>
    %25 = vector.shape_cast %24 : vector<1xf32> to vector<1x1x1xf32>
    %26 = vector.extract %25[0, 0, 0] : f32 from vector<1x1x1xf32>
    %cst_7 = arith.constant 0.000000e+00 : f32
    %27 = vector.broadcast %cst_7 : f32 to vector<1x8xf32>
    %28 = arith.cmpf one, %22, %27 : vector<1x8xf32>
    %29 = arith.extui %28 : vector<1x8xi1> to vector<1x8xi32>
    %30 = arith.sitofp %29 : vector<1x8xi32> to vector<1x8xf32>
    %31 = vector.shape_cast %30 : vector<1x8xf32> to vector<1x1x8xf32>
    %cst_8 = arith.constant dense<0.000000e+00> : vector<1xf32>
    %32 = vector.multi_reduction <add>, %31, %cst_8 [1, 2] : vector<1x1x8xf32> to vector<1xf32>
    %33 = vector.shape_cast %32 : vector<1xf32> to vector<1x1x1xf32>
    %34 = vector.extract %33[0, 0, 0] : f32 from vector<1x1x1xf32>
    %35 = arith.divf %26, %34 : f32
    %36 = vector.broadcast %35 : f32 to vector<1x1xf32>
    %c0_9 = arith.constant 0 : index
    %c0_10 = arith.constant 0 : index
    %37 = vector.load %arg3[%c0_9, %c0_10] : memref<1x1xf32, #tpu.memory_space<vmem>>, vector<1x1xf32>
    tpu.vector_store %arg3[%c0_9, %c0_10], %36 {strides = array<i32>} : memref<1x1xf32, #tpu.memory_space<vmem>>, vector<1x1xf32>,
    return
  }
  func.func @transform_0(%arg0: i32) -> (i32, i32) {
    %c0_i32 = arith.constant 0 : i32
    %c0_i32_0 = arith.constant 0 : i32
    %c0_i32_1 = arith.constant 0 : i32
    return %c0_i32, %c0_i32_0 : i32, i32
  }
  func.func @transform_1(%arg0: i32) -> (i32, i32) {
    %c0_i32 = arith.constant 0 : i32
    %c0_i32_0 = arith.constant 0 : i32
    %c0_i32_1 = arith.constant 0 : i32
    return %c0_i32, %c0_i32_0 : i32, i32
  }
  func.func @transform_2(%arg0: i32) -> (i32, i32) {
    %c0_i32 = arith.constant 0 : i32
    %c0_i32_0 = arith.constant 0 : i32
    %c0_i32_1 = arith.constant 0 : i32
    return %c0_i32, %c0_i32_0 : i32, i32
  }
}

</mosaic_0001>

<llo_original>
// kernel: tpu_custom_call.1
$region0: #{tpu_custom_call.1}
  #allocation0 [shape = 'u32[]', space=smem, size = 0x4, offset = 0x4, fixed_abs, tag = 'smem constant byte address 0x4 - core index']
  #allocation1 [shape = 'u32[72,128]{1,0:T(1,128)}', space=vmem, size = 0x9000, scoped, tag = 'internal scratch']
  %s0 = inlined_call_operand.vmem [shape: f32[1,8], index: 0, kind: input, shape index: {}]
  %s1 = inlined_call_operand.vmem [shape: f32[8,1], index: 1, kind: input, shape index: {}]
  %s2 = inlined_call_operand.hbm [shape: f32[1,1], index: 2, kind: output, shape index: {}]
  %s3 = sld [smem:[#allocation0]]
  $region18: #{tpu_custom_call.1} parent=0
    _
  %s5 = ssub.s32 1, %s3
  %s6 = scalar_select 0, %s5, %s3
  $region1: #{tpu_custom_call.1} parent=0
    #allocation2 [shape = 'u8[512]{0}', space=vmem, size = 0x400, scoped, tag = 'output window, operand 0, single buffered']
    #allocation3 [shape = 's32[1]{0}', space=sflag, size = 0x4, scoped, tag = 'scoped memory for tpu_custom_call.1']
    %7 = vsyncpa [#allocation3], 0
    // Predicated region
    $region2: #{tpu_custom_call.1} parent=1 // pred_check
      _
    $region3: #{tpu_custom_call.1} parent=1 // pred_check_branch
      %9 = sbr.rel (0) target = $region5
    $region4: #{tpu_custom_call.1} parent=1 // pred_region
      _
    $region5: #{tpu_custom_call.1} parent=1 // pred_fallthru
      _
    // Predicated region
    $region6: #{tpu_custom_call.1} parent=1 // pred_check
      _
    $region7: #{tpu_custom_call.1} parent=1 // pred_check_branch
      %11 = sbr.rel (0) target = $region9
    $region8: #{tpu_custom_call.1} parent=1 // pred_region
      _
    $region9: #{tpu_custom_call.1} parent=1 // pred_fallthru
      _
    %v12 = vld [vmem:[%s0] sm:$0x1]
    %v13 = vld [vmem:[%s1] sm:$0xff]
    %15 = vset.pattern.permute.xlu0 0
    %16 = vperm.xlu0 %15, %v13
    %v17 = vpop.permute.xlu0 %16
    %v20 = vperm.slane %v12, 0
    %v22 = vlaneseq
    %v23 = vshrl.u32 %v22, 7
    %v24 = vlaneseq
    %v25 = vand.u32 %v24, 127
    %vm26 = vcmp.lt.f32.partialorder %v17, %v20
    %vm27 = vcmp.eq.f32.partialorder %v17, %v20
    %vm28 = vcmp.lt.s32.totalorder %v23, %v25
    %vm29 = vmand %vm27, %vm28
    %vm30 = vmor %vm26, %vm29
    %v31 = vsel %vm30, 1, 0
    %v32 = vcvt.s32.f32 %v31
    %vm33 = vcmask 64512
    %v34 = vsel %vm33, %v32, 0.0
    %v35 = vrot.slane %v34, 4
    %v36 = vadd.f32 %v34, %v35
    %v37 = vrot.slane %v36, 2
    %v38 = vadd.f32 %v36, %v37
    %v39 = vrot.slane %v38, 1
    %v40 = vadd.f32 %v38, %v39
    %vm41 = vcmp.lt.f32.partialorder %v40, 4.0
    %v42 = vsel %vm41, 1, 0
    %v43 = vcvt.s32.f32 %v42
    %v44 = vmul.f32 %v12, %v43
    %vm45 = vcmask 57344
    %v46 = vsel %vm45, %v44, 0.0
    %47 = vadd.xlane.f32.xlu0 %v46
    %v48 = vpop.xlane.xlu0 %47
    %v49 = vrot.slane %v48, 4
    %v50 = vadd.f32 %v48, %v49
    %v51 = vrot.slane %v50, 2
    %v52 = vadd.f32 %v50, %v51
    %v53 = vrot.slane %v52, 1
    %v54 = vadd.f32 %v52, %v53
    %s55 = vtos %v54
    %vm56 = vcmp.ne.f32.partialorder %v44, 0.0
    %v57 = vsel %vm56, 1, 0
    %v58 = vcvt.s32.f32 %v57
    %v59 = vsel %vm45, %v58, 0.0
    %60 = vadd.xlane.f32.xlu0 %v59
    %v61 = vpop.xlane.xlu0 %60
    %v62 = vrot.slane %v61, 4
    %v63 = vadd.f32 %v61, %v62
    %v64 = vrot.slane %v63, 2
    %v65 = vadd.f32 %v63, %v64
    %v66 = vrot.slane %v65, 1
    %v67 = vadd.f32 %v65, %v66
    %s68 = vtos %v67
    %v69 = vstv %s68
    %v70 = vrcp.pop %v69
    %v71 = vmul.f32 %v69, %v70
    %v72 = vsub.f32 1.0, %v71
    %v73 = vmul.f32 %v70, %v72
    %v74 = vadd.f32 %v70, %v73
    %vm75 = vweird.f32 %v69
    %vm76 = vweird.f32 %v70
    %vm77 = vmor %vm75, %vm76
    %v78 = vsel %vm77, %v70, %v74
    %v79 = vand.u32 2147483647, %v69
    %vm80 = vcmp.eq.f32.partialorder %v79, 8.507059e+37
    %v81 = vand.u32 %v69, 2147483648
    %v82 = vor.u32 1.1754944e-38, %v81
    %v83 = vsel %vm80, %v82, %v78
    %s84 = vtos %v83
    %s85 = smul.f32 %s55, %s84
    %v86 = vstv %s85
    %vm87 = vcmask 0
    %88 = vst.msk [vmem:[#allocation2] sm:$0x1] %vm87, %v86
    // Predicated region
    $region10: #{tpu_custom_call.1} parent=1 // pred_check
      _
    $region11: #{tpu_custom_call.1} parent=1 // pred_check_branch
      %90 = sbr.rel (0) target = $region13
    $region12: #{tpu_custom_call.1} parent=1 // pred_region
      %92 = vsyncadd [#allocation3], 0
      %s94 = sshll.u32 [#allocation2], 4
      %s95 = int_to_ptr.vmem [resolvable:$true] %s94
      %s96 = sshll.u32 %s2, 4
      %s97 = int_to_ptr.hbm [resolvable:$true] %s96
      %99 = dma.vmem_to_hbm [thread:$0]  %s95, 16, %s97, [#allocation3]
    $region13: #{tpu_custom_call.1} parent=1 // pred_fallthru
      _
    // Predicated region
    $region14: #{tpu_custom_call.1} parent=1 // pred_check
      _
    $region15: #{tpu_custom_call.1} parent=1 // pred_check_branch
      %101 = sbr.rel (0) target = $region17
    $region16: #{tpu_custom_call.1} parent=1 // pred_region
      %103 = dma.done [#allocation3], 16
    $region17: #{tpu_custom_call.1} parent=1 // pred_fallthru
      _
    %104 = vsyncpa [#allocation3], 1

</llo_original>
